<compile_context>
chip_gen: v7x
topology: tpu7x:2x2x1
jax: 0.10.0
libtpu: 0.0.40
codegen_flags: <defaults>
</compile_context>

<pallas_src>
import functools

import numpy as np

import jax
import jax.numpy as jnp
from jax import lax
from jax.experimental import pallas as pl
from jax.experimental.pallas import tpu as pltpu

NEG_INFINITY = -1000000.0


def _tpu_generation():
    """Best-effort TPU generation (0 if unknown)."""
    try:
        kind = jax.devices()[0].device_kind.lower()
    except Exception:  # pragma: no cover - defensive
        return 0
    for gen in (7, 6, 5, 4, 3, 2):
        if f"v{gen}" in kind or f"tpu{gen}" in kind:
            return gen
    return 0


def _pick_tm(n_tokens, tm_request):
    """Token-tile size: as large as requested, but keep >= 2 tiles when
    possible so v7x's two TensorCores both get grid work."""
    tm = min(tm_request, n_tokens)
    if n_tokens // tm < 2 and n_tokens >= 256 and (n_tokens // 2) % 128 == 0:
        tm = n_tokens // 2
    tm = max(128, (tm // 128) * 128)
    assert n_tokens % tm == 0, (n_tokens, tm)
    return tm


# ----------------------------------------------------------------------------
# Pallas kernel: embed + head matmul + subs parameterization + gather + weight
# ----------------------------------------------------------------------------
def _fused_subs_loss_kernel(side_ref, emb_t_ref, tvec_ref, w_t_ref, b_ref,
                            o_ref, *, mask_index, use_bf16_exp):
    # Lane-dense layout: tokens -> lanes, vocab/hidden -> sublanes.
    side = side_ref[...]                      # (4, tm) i32 : [xt, x0, sigma, wt]
    xt = side[0:1, :]                         # (1, tm) i32
    x0 = side[1:2, :]                         # (1, tm) i32
    scal = pltpu.bitcast(side[2:4, :], jnp.float32)   # (2, tm) f32
    sigma = scal[0:1, :]
    wt = scal[1:2, :]

    tm = side.shape[1]
    D, V = emb_t_ref.shape

    # --- synthetic backbone trunk (fused): hidden^T = Emb^T @ onehot(xt)^T ---
    row_v = lax.broadcasted_iota(jnp.int32, (V, tm), 0)
    onehot_t = jnp.where(row_v == xt, 1.0, 0.0).astype(jnp.bfloat16)   # (V, tm)
    del row_v  # keep the i32 (V, tm) iota's live range short (vreg pressure)
    hidden_t = jnp.dot(emb_t_ref[...], onehot_t,
                       preferred_element_type=jnp.float32)             # (D, tm)
    hidden_t = hidden_t + tvec_ref[...] * sigma                        # (D,1)*(1,tm)

    # --- vocab head: logits^T = W^T @ hidden^T + b'  (bf16 MXU, f32 acc) ---
    # Mask-logit suppression (logits[:, mask_index] += NEG_INFINITY) is already
    # folded into the bias column b' in the wrapper.
    logits_t = jnp.dot(w_t_ref[...], hidden_t.astype(jnp.bfloat16),
                       preferred_element_type=jnp.float32) + b_ref[...]  # (V, tm)

    # log-softmax denominator over the vocab (sublane) axis.
    m = jnp.max(logits_t, axis=0, keepdims=True)                        # (1, tm)
    shifted = logits_t - m
    if use_bf16_exp:
        # Max-subtracted exponents are in [0, 1]; bf16 exp on the EUP is ~2x
        # faster on v6e/v7x and accurate enough for a training loss.
        p = jnp.exp(shifted.astype(jnp.bfloat16)).astype(jnp.float32)
    else:
        p = jnp.exp(shifted)
    lse = m + jnp.log(jnp.sum(p, axis=0, keepdims=True))                # (1, tm)

    # Gather the raw logit at x0 (x0 is never the mask token, so the folded
    # bias does not disturb it).  Rematerialize the iota here so it is not
    # held live across the matmuls and the exp.
    row_v = lax.broadcasted_iota(jnp.int32, (V, tm), 0)
    gathered = jnp.sum(jnp.where(row_v == x0, logits_t, jnp.float32(0.0)),
                       axis=0, keepdims=True)                           # (1, tm)
    log_p_masked = gathered - lse
    # Unmasked rows (xt != mask): carved logits are {0 at xt, -inf elsewhere},
    # so gathering at x0 is simply 0 if x0 == xt else NEG_INFINITY.
    log_p_unmasked = jnp.where(x0 == xt, jnp.float32(0.0),
                               jnp.float32(NEG_INFINITY))
    log_p = jnp.where(xt != mask_index, log_p_unmasked, log_p_masked)

    # loss = -log_p_theta * (dsigma / expm1(sigma))
    o_ref[...] = (-log_p * wt).astype(o_ref.dtype)


def subs_loss_pallas(tokens, scal, emb_t, tvec_col, w_t, b_col, *,
                     mask_index, tm=512, use_bf16_exp=None):
    """tokens (2, N) int32 [xt; x0], scal (2, N) f32 [sigma; wt],
    emb_t (D, V) bf16, tvec_col (D, 1) f32, w_t (V, D) bf16,
    b_col (V, 1) f32 (mask column already suppressed)
    -> (1, N) f32 per-token loss.  Requires x0 != mask_index everywhere."""
    _, N = tokens.shape
    D, V = emb_t.shape
    assert w_t.shape == (V, D)
    assert b_col.shape == (V, 1) and tvec_col.shape == (D, 1)
    assert V % 128 == 0, "vocab (incl. mask) must be lane-aligned"
    assert D % 128 == 0, "hidden width must be lane-aligned (pad in wrapper)"
    tm = _pick_tm(N, tm)

    if use_bf16_exp is None:
        use_bf16_exp = _tpu_generation() >= 6

    # Pack [xt; x0; bits(sigma); bits(wt)] into one (4, N) i32 side input so a
    # single moving-window DMA per grid step covers all per-token data.
    scal_bits = lax.bitcast_convert_type(scal.astype(jnp.float32), jnp.int32)
    side = jnp.concatenate([tokens.astype(jnp.int32), scal_bits], axis=0)

    grid = (N // tm,)
    kernel = functools.partial(_fused_subs_loss_kernel,
                               mask_index=mask_index,
                               use_bf16_exp=use_bf16_exp)
    return pl.pallas_call(
        kernel,
        out_shape=jax.ShapeDtypeStruct((1, N), jnp.float32),
        grid_spec=pltpu.PrefetchScalarGridSpec(
            num_scalar_prefetch=0,
            grid=grid,
            in_specs=[
                pl.BlockSpec((4, tm), lambda i: (0, i)),   # [xt;x0;sigma;wt]
                pl.BlockSpec((D, V), lambda i: (0, 0)),    # Emb^T (resident)
                pl.BlockSpec((D, 1), lambda i: (0, 0)),    # time_vec column
                pl.BlockSpec((V, D), lambda i: (0, 0)),    # W_head^T (resident)
                pl.BlockSpec((V, 1), lambda i: (0, 0)),    # bias column (mask-folded)
            ],
            out_specs=pl.BlockSpec((1, tm), lambda i: (0, i)),  # lane-dense out
        ),
        compiler_params=pltpu.CompilerParams(
            dimension_semantics=("parallel",)),
    )(side, emb_t, tvec_col, w_t, b_col)


# ----------------------------------------------------------------------------
# Plain-JAX glue reproducing CategoricalDiffusion.forward (subs / T=0 path)
# ----------------------------------------------------------------------------
def patchify(x, patch_size):
    # x: (B, C, H, W) -> (B, h_*w_, C*p*p)   (matches torch einsum nchpwq->nhwcpq)
    b, c, h, w = x.shape
    p = patch_size
    h_, w_ = h // p, w // p
    x = x.reshape(b, c, h_, p, w_, p)
    x = jnp.transpose(x, (0, 2, 4, 1, 3, 5))          # n h w c p q
    return x.reshape(b, h_ * w_, c * p * p)


def sample_t(key, n, sampling_eps, antithetic_sampling=True):
    eps_t = jax.random.uniform(key, (n,), dtype=jnp.float32)
    if antithetic_sampling:
        offset = jnp.arange(n, dtype=jnp.float32) / n
        eps_t = (eps_t / n + offset) % 1.0
    return (1.0 - sampling_eps) * eps_t + sampling_eps


def loglinear_noise(t, eps=1e-3):
    # Standard MDLM LogLinearNoise: sigma(t) = -log1p(-(1-eps) t)
    sigma = -jnp.log1p(-(1.0 - eps) * t)
    dsigma = (1.0 - eps) / (1.0 - (1.0 - eps) * t)
    return sigma, dsigma


def _prepare_inputs(latent, key, *, mask_index, sampling_eps=1e-3,
                    patch_size=1):
    """Noise the tokens and pack per-token side data lane-dense.

    Note: x0 comes from discrete-VAE codes (< vocab_size), so x0 is never the
    mask token -- the kernel's unmasked fast path and bias-fold rely on this.
    """
    x0 = patchify(latent, patch_size)[..., 0].astype(jnp.int32)   # (B, L)
    B, L = x0.shape

    k_t, k_mask = jax.random.split(key)
    t = sample_t(k_t, B, sampling_eps)                # (B,)  (T == 0 branch)
    sigma, dsigma = loglinear_noise(t)
    move_chance = 1.0 - jnp.exp(-sigma)[:, None]      # (B, 1)

    # q_xt: mask tokens with probability move_chance
    move = jax.random.uniform(k_mask, (B, L)) < move_chance
    xt = jnp.where(move, mask_index, x0).astype(jnp.int32)

    wt = dsigma / jnp.expm1(sigma)                    # (B,)
    N = B * L
    tokens = jnp.stack([xt.reshape(N), x0.reshape(N)], axis=0)      # (2, N) i32
    scal = jnp.stack(
        [jnp.broadcast_to(sigma[:, None], (B, L)).reshape(N),
         jnp.broadcast_to(wt[:, None], (B, L)).reshape(N)],
        axis=0).astype(jnp.float32)                                  # (2, N) f32
    return tokens, scal, (B, L)


def categorical_diffusion_forward(latent, params, key, *, mask_index,
                                  sampling_eps=1e-3, patch_size=1, tm=512,
                                  use_bf16_exp=None):
    """latent: (B, 1, H, W) int32 token map. Returns per-token loss (B, L)."""
    tokens, scal, (B, L) = _prepare_inputs(
        latent, key, mask_index=mask_index, sampling_eps=sampling_eps,
        patch_size=patch_size)

    emb = params["emb"]            # (V, D)
    w_head = params["w_head"]      # (D, V)
    time_vec = params["time_vec"]  # (D,)
    D = emb.shape[1]

    # Pad hidden width to a lane multiple so the MXU K axis is fully used.
    Dp = ((D + 127) // 128) * 128
    if Dp != D:
        emb = jnp.pad(emb, ((0, 0), (0, Dp - D)))
        w_head = jnp.pad(w_head, ((0, Dp - D), (0, 0)))
        time_vec = jnp.pad(time_vec, (0, Dp - D))

    emb_t = emb.T.astype(jnp.bfloat16)                    # (Dp, V)
    w_t = w_head.T.astype(jnp.bfloat16)                   # (V, Dp)
    # Fold the subs mask-logit suppression into the bias column: since x0 is
    # never the mask token, only the logsumexp sees it (same math as
    # logits[:, mask_index] += NEG_INFINITY in the kernel, for free).
    b_head = params["b_head"].astype(jnp.float32).at[mask_index].add(
        jnp.float32(NEG_INFINITY))
    b_col = b_head.reshape(-1, 1)                                  # (V, 1)
    tvec_col = time_vec.reshape(-1, 1).astype(jnp.float32)         # (Dp, 1)

    out = subs_loss_pallas(tokens, scal, emb_t, tvec_col, w_t, b_col,
                           mask_index=mask_index, tm=tm,
                           use_bf16_exp=use_bf16_exp)              # (1, N)
    return out.reshape(B, L)


# ----------------------------------------------------------------------------
# Pure-JAX reference of the fused path (bf16-cast operands, matching exp dtype)
# ----------------------------------------------------------------------------
def _reference(tokens, scal, params, mask_index, use_bf16_exp):
    xt, x0 = tokens[0], tokens[1]
    sigma_tok, wt_tok = scal[0], scal[1]
    emb = params["emb"].astype(jnp.bfloat16).astype(jnp.float32)
    w = params["w_head"].astype(jnp.bfloat16).astype(jnp.float32)
    hidden = emb[xt] + sigma_tok[:, None] * params["time_vec"][None, :]
    hidden = hidden.astype(jnp.bfloat16).astype(jnp.float32)
    logits = hidden @ w + params["b_head"][None, :]
    logits = logits.at[:, mask_index].add(NEG_INFINITY)
    m = jnp.max(logits, axis=-1, keepdims=True)
    shifted = logits - m
    if use_bf16_exp:
        p = jnp.exp(shifted.astype(jnp.bfloat16)).astype(jnp.float32)
    else:
        p = jnp.exp(shifted)
    lse = m + jnp.log(jnp.sum(p, axis=-1, keepdims=True))
    logits = logits - lse
    col = jnp.arange(logits.shape[-1])[None, :]
    unmasked = (xt != mask_index)[:, None]
    carve = jnp.where(col == xt[:, None], 0.0, NEG_INFINITY)
    logits = jnp.where(unmasked, carve, logits)
    log_p = jnp.take_along_axis(logits, x0[:, None], axis=-1)[:, 0]
    return -log_p * wt_tok


if __name__ == "__main__":
    B, H, W = 2, 16, 16          # L = 256, N = B*L = 512 -> two tm=256 tiles
    D = 128                      # hidden size (full-lane MXU K)
    VOCAB = 127                  # discrete-VAE vocab; mask appended
    mask_index = VOCAB
    V = VOCAB + 1                # 128 (lane-aligned)

    root = jax.random.PRNGKey(0)
    k_lat, k_emb, k_w, k_b, k_tv, k_fwd = jax.random.split(root, 6)

    latent = jax.random.randint(k_lat, (B, 1, H, W), 0, VOCAB, dtype=jnp.int32)

    params = {
        "emb": 0.02 * jax.random.normal(k_emb, (V, D), dtype=jnp.float32),
        "w_head": 0.05 * jax.random.normal(k_w, (D, V), dtype=jnp.float32),
        "b_head": 0.01 * jax.random.normal(k_b, (V,), dtype=jnp.float32),
        "time_vec": 0.1 * jax.random.normal(k_tv, (D,), dtype=jnp.float32),
    }

    use_bf16_exp = _tpu_generation() >= 6

    loss = categorical_diffusion_forward(latent, params, k_fwd,
                                         mask_index=mask_index,
                                         use_bf16_exp=use_bf16_exp)
    loss = jax.block_until_ready(loss)
    assert loss.shape == (B, H * W)
    assert bool(jnp.all(jnp.isfinite(loss)))

    # Cheap correctness check against a pure-JAX reference of the fused path.
    tokens, scal, _ = _prepare_inputs(latent, k_fwd, mask_index=mask_index)
    ref = _reference(tokens, scal, params, mask_index,
                     use_bf16_exp).reshape(B, H * W)
    np.testing.assert_allclose(np.asarray(loss), np.asarray(ref),
                               rtol=5e-3, atol=1e-2)
    print("KERNEL_OK")
</pallas_src>

<mosaic_0001>
module attributes {stable_mosaic.version = 11 : i64} {
  func.func @_fused_subs_loss_kernel(%arg0: i32, %arg1: memref<4x256xi32, #tpu.memory_space<vmem>>, %arg2: memref<128x128xbf16, #tpu.memory_space<vmem>>, %arg3: memref<128x1xf32, #tpu.memory_space<vmem>>, %arg4: memref<128x128xbf16, #tpu.memory_space<vmem>>, %arg5: memref<128x1xf32, #tpu.memory_space<vmem>>, %arg6: memref<1x256xf32, #tpu.memory_space<vmem>>) attributes {dimension_semantics = [#tpu.dimension_semantics<parallel>], iteration_bounds = array<i64: 2>, scalar_prefetch = 0 : i64, scratch_operands = 0 : i64, tpu.core_type = #tpu.core_type<tc>, window_params = [{transform_indices = @transform_0, window_bounds = array<i64: 4, 256>}, {pipeline_mode = #tpu.pipeline_mode<synchronous>, transform_indices = @transform_1, window_bounds = array<i64: 128, 128>}, {pipeline_mode = #tpu.pipeline_mode<synchronous>, transform_indices = @transform_2, window_bounds = array<i64: 128, 1>}, {pipeline_mode = #tpu.pipeline_mode<synchronous>, transform_indices = @transform_3, window_bounds = array<i64: 128, 128>}, {pipeline_mode = #tpu.pipeline_mode<synchronous>, transform_indices = @transform_4, window_bounds = array<i64: 128, 1>}, {transform_indices = @transform_5, window_bounds = array<i64: 1, 256>}]} {
    %c0 = arith.constant 0 : index
    %c0_0 = arith.constant 0 : index
    %0 = vector.load %arg1[%c0, %c0_0] : memref<4x256xi32, #tpu.memory_space<vmem>>, vector<4x256xi32>
    %1 = vector.extract_strided_slice %0 {offsets = [0, 0], sizes = [1, 256], strides = [1, 1]} : vector<4x256xi32> to vector<1x256xi32>
    %2 = vector.extract_strided_slice %0 {offsets = [1, 0], sizes = [1, 256], strides = [1, 1]} : vector<4x256xi32> to vector<1x256xi32>
    %3 = vector.extract_strided_slice %0 {offsets = [2, 0], sizes = [2, 256], strides = [1, 1]} : vector<4x256xi32> to vector<2x256xi32>
    %4 = tpu.bitcast %3 : vector<2x256xi32> -> vector<2x256xf32>
    %5 = vector.extract_strided_slice %4 {offsets = [0, 0], sizes = [1, 256], strides = [1, 1]} : vector<2x256xf32> to vector<1x256xf32>
    %6 = vector.extract_strided_slice %4 {offsets = [1, 0], sizes = [1, 256], strides = [1, 1]} : vector<2x256xf32> to vector<1x256xf32>
    %7 = tpu.iota {dimensions = array<i32: 0>} : vector<128x256xi32>
    %8 = vector.broadcast %1 : vector<1x256xi32> to vector<128x256xi32>
    %9 = arith.cmpi eq, %7, %8 : vector<128x256xi32>
    %cst = arith.constant 1.000000e+00 : f32
    %cst_1 = arith.constant 0.000000e+00 : f32
    %10 = vector.broadcast %cst : f32 to vector<128x256xf32>
    %11 = vector.broadcast %cst_1 : f32 to vector<128x256xf32>
    %12 = arith.select %9, %10, %11 : vector<128x256xi1>, vector<128x256xf32>
    %13 = arith.truncf %12 : vector<128x256xf32> to vector<128x256xbf16>
    %c0_2 = arith.constant 0 : index
    %c0_3 = arith.constant 0 : index
    %14 = vector.load %arg2[%c0_2, %c0_3] : memref<128x128xbf16, #tpu.memory_space<vmem>>, vector<128x128xbf16>
    %cst_4 = arith.constant dense<0.000000e+00> : vector<128x256xf32>
    %15 = tpu.matmul %14, %13, %cst_4 {dimension_numbers = #tpu.dot_dimension_numbers<[1], [0], [0], [1], [0, 0, 1, 1], [], []>} : vector<128x128xbf16>, vector<128x256xbf16>, vector<128x256xf32> -> vector<128x256xf32>
    %c0_5 = arith.constant 0 : index
    %c0_6 = arith.constant 0 : index
    %16 = vector.load %arg3[%c0_5, %c0_6] : memref<128x1xf32, #tpu.memory_space<vmem>>, vector<128x1xf32>
    %17 = vector.broadcast %16 : vector<128x1xf32> to vector<128x256xf32>
    %18 = vector.broadcast %5 : vector<1x256xf32> to vector<128x256xf32>
    %19 = arith.mulf %17, %18 : vector<128x256xf32>
    %20 = arith.addf %15, %19 : vector<128x256xf32>
    %c0_7 = arith.constant 0 : index
    %c0_8 = arith.constant 0 : index
    %21 = vector.load %arg4[%c0_7, %c0_8] : memref<128x128xbf16, #tpu.memory_space<vmem>>, vector<128x128xbf16>
    %22 = arith.truncf %20 : vector<128x256xf32> to vector<128x256xbf16>
    %cst_9 = arith.constant dense<0.000000e+00> : vector<128x256xf32>
    %23 = tpu.matmul %21, %22, %cst_9 {dimension_numbers = #tpu.dot_dimension_numbers<[1], [0], [0], [1], [0, 0, 1, 1], [], []>} : vector<128x128xbf16>, vector<128x256xbf16>, vector<128x256xf32> -> vector<128x256xf32>
    %c0_10 = arith.constant 0 : index
    %c0_11 = arith.constant 0 : index
    %24 = vector.load %arg5[%c0_10, %c0_11] : memref<128x1xf32, #tpu.memory_space<vmem>>, vector<128x1xf32>
    %25 = vector.broadcast %24 : vector<128x1xf32> to vector<128x256xf32>
    %26 = arith.addf %23, %25 : vector<128x256xf32>
    %cst_12 = arith.constant dense<0xFF800000> : vector<256xf32>
    %27 = vector.multi_reduction <maximumf>, %26, %cst_12 [0] : vector<128x256xf32> to vector<256xf32>
    %28 = vector.shape_cast %27 : vector<256xf32> to vector<1x256xf32>
    %29 = vector.broadcast %28 : vector<1x256xf32> to vector<128x256xf32>
    %30 = arith.subf %26, %29 : vector<128x256xf32>
    %31 = math.exp %30 : vector<128x256xf32>
    %cst_13 = arith.constant dense<0.000000e+00> : vector<256xf32>
    %32 = vector.multi_reduction <add>, %31, %cst_13 [0] : vector<128x256xf32> to vector<256xf32>
    %33 = vector.shape_cast %32 : vector<256xf32> to vector<1x256xf32>
    %34 = math.log %33 : vector<1x256xf32>
    %35 = arith.addf %28, %34 : vector<1x256xf32>
    %36 = tpu.iota {dimensions = array<i32: 0>} : vector<128x256xi32>
    %37 = vector.broadcast %2 : vector<1x256xi32> to vector<128x256xi32>
    %38 = arith.cmpi eq, %36, %37 : vector<128x256xi32>
    %cst_14 = arith.constant 0.000000e+00 : f32
    %39 = vector.broadcast %cst_14 : f32 to vector<128x256xf32>
    %40 = arith.select %38, %26, %39 : vector<128x256xi1>, vector<128x256xf32>
    %cst_15 = arith.constant dense<0.000000e+00> : vector<256xf32>
    %41 = vector.multi_reduction <add>, %40, %cst_15 [0] : vector<128x256xf32> to vector<256xf32>
    %42 = vector.shape_cast %41 : vector<256xf32> to vector<1x256xf32>
    %43 = arith.subf %42, %35 : vector<1x256xf32>
    %44 = arith.cmpi eq, %2, %1 : vector<1x256xi32>
    %cst_16 = arith.constant 0.000000e+00 : f32
    %cst_17 = arith.constant -1.000000e+06 : f32
    %45 = vector.broadcast %cst_16 : f32 to vector<1x256xf32>
    %46 = vector.broadcast %cst_17 : f32 to vector<1x256xf32>
    %47 = arith.select %44, %45, %46 : vector<1x256xi1>, vector<1x256xf32>
    %c127_i32 = arith.constant 127 : i32
    %48 = vector.broadcast %c127_i32 : i32 to vector<1x256xi32>
    %49 = arith.cmpi ne, %1, %48 : vector<1x256xi32>
    %50 = arith.select %49, %47, %43 : vector<1x256xi1>, vector<1x256xf32>
    %cst_18 = arith.constant 0.000000e+00 : f32
    %51 = vector.broadcast %cst_18 : f32 to vector<1x256xf32>
    %52 = arith.subf %51, %50 : vector<1x256xf32>
    %53 = arith.mulf %52, %6 : vector<1x256xf32>
    %c0_19 = arith.constant 0 : index
    %c0_20 = arith.constant 0 : index
    %54 = vector.load %arg6[%c0_19, %c0_20] : memref<1x256xf32, #tpu.memory_space<vmem>>, vector<1x256xf32>
    tpu.vector_store %arg6[%c0_19, %c0_20], %53 {strides = array<i32>} : memref<1x256xf32, #tpu.memory_space<vmem>>, vector<1x256xf32>,
    return
  }
  func.func @transform_0(%arg0: i32) -> (i32, i32) {
    %c0_i32 = arith.constant 0 : i32
    %c0_i32_0 = arith.constant 0 : i32
    return %c0_i32, %arg0 : i32, i32
  }
  func.func @transform_1(%arg0: i32) -> (i32, i32) {
    %c0_i32 = arith.constant 0 : i32
    %c0_i32_0 = arith.constant 0 : i32
    %c0_i32_1 = arith.constant 0 : i32
    return %c0_i32, %c0_i32_0 : i32, i32
  }
  func.func @transform_2(%arg0: i32) -> (i32, i32) {
    %c0_i32 = arith.constant 0 : i32
    %c0_i32_0 = arith.constant 0 : i32
    %c0_i32_1 = arith.constant 0 : i32
    return %c0_i32, %c0_i32_0 : i32, i32
  }
  func.func @transform_3(%arg0: i32) -> (i32, i32) {
    %c0_i32 = arith.constant 0 : i32
    %c0_i32_0 = arith.constant 0 : i32
    %c0_i32_1 = arith.constant 0 : i32
    return %c0_i32, %c0_i32_0 : i32, i32
  }
  func.func @transform_4(%arg0: i32) -> (i32, i32) {
    %c0_i32 = arith.constant 0 : i32
    %c0_i32_0 = arith.constant 0 : i32
    %c0_i32_1 = arith.constant 0 : i32
    return %c0_i32, %c0_i32_0 : i32, i32
  }
  func.func @transform_5(%arg0: i32) -> (i32, i32) {
    %c0_i32 = arith.constant 0 : i32
    %c0_i32_0 = arith.constant 0 : i32
    return %c0_i32, %arg0 : i32, i32
  }
}

</mosaic_0001>

<llo_original>
// kernel: tpu_custom_call.1
$region0: #{tpu_custom_call.1}
  #allocation0 [shape = 'u32[]', space=smem, size = 0x4, offset = 0x4, fixed_abs, tag = 'smem constant byte address 0x4 - core index']
  #allocation1 [shape = 'u32[144,128]{1,0:T(1,128)}', space=vmem, size = 0x12000, scoped, tag = 'internal scratch']
  %s0 = inlined_call_operand.vmem [shape: s32[4,512], index: 0, kind: input, shape index: {}]
  %s1 = inlined_call_operand.vmem [shape: bf16[128,128], index: 1, kind: input, shape index: {}]
  %s2 = inlined_call_operand.vmem [shape: f32[128,1], index: 2, kind: input, shape index: {}]
  %s3 = inlined_call_operand.vmem [shape: bf16[128,128], index: 3, kind: input, shape index: {}]
  %s4 = inlined_call_operand.vmem [shape: f32[128,1], index: 4, kind: input, shape index: {}]
  %s5 = inlined_call_operand.hbm [shape: f32[1,512], index: 5, kind: output, shape index: {}]
  %s6 = sld [smem:[#allocation0]]
  $region53: #{tpu_custom_call.1} parent=0
    _
  %s8 = ssub.s32 1, %s6
  %s9 = scalar_select 0, %s8, %s6
  $region1: #{tpu_custom_call.1} parent=0
    #allocation2 [shape = 'u8[2048]{0}', space=vmem, size = 0x800, scoped, tag = 'output window, operand 0']
    #allocation3 [shape = 's32[2]{0}', space=sflag, size = 0x8, scoped, tag = 'scoped memory for tpu_custom_call.1']
    %10 = vsyncpa [#allocation3], 0
    %s11 = scalar_lea.sflag [#allocation3], 1
    %12 = vsyncpa %s11, 0
    loop: start=0, step=1, limit=4
    $region2: #{tpu_custom_call.1} parent=1 // loop_pre_header
      _
    $region3: #{tpu_custom_call.1} parent=1 // loop_header
      %s14 = sphi 0, %s18
      %p15 = scmp.ge.s32.totalorder %s14, 4
      %s24 = sphi 0, %s26
      %s27 = sphi 0, %s24
      %s28 = sphi 0, %s27
      %s44 = sphi 0, %s28
      %s48 = sphi 0, %s48
      %s50 = sphi 0, %s48
      %s51 = sphi 0, %s50
      %s65 = sphi 0, %s51
      %s69 = sphi 0, %s69
      %s71 = sphi 0, %s69
      %s72 = sphi 0, %s71
      %s86 = sphi 0, %s72
      %s90 = sphi 0, %s90
      %s92 = sphi 0, %s90
      %s93 = sphi 0, %s92
      %s107 = sphi 0, %s93
      %s111 = sphi 0, %s111
      %s113 = sphi 0, %s111
      %s114 = sphi 0, %s113
      %s128 = sphi 0, %s114
      %s134 = sphi 0, %s136
      %s137 = sphi 0, %s134
      %s138 = sphi 0, %s137
      %s154 = sphi 0, %s138
    $region4: #{tpu_custom_call.1} parent=1 // loop_header_branch
      %17 = sbr.rel (%p15) target = $region8
    $region5: #{tpu_custom_call.1} parent=1 // loop_body
      %s19 = ssub.s32 %s14, 1
      %s20 = ssub.s32 %s14, 2
      %s21 = sadd.s32 %s14, 1
      %s22 = ssub.s32 %s14, %s21
      %p23 = scmp.eq.s32.totalorder %s22, 0
      %s25 = sadd.s32 %s24, 1
      %s26 = scalar_select %p23, %s24, %s25
      %p29 = pneg %p23
      %p30 = scmp.eq.s32.totalorder %s14, 1
      %p31 = por %p29, %p30
      %p32 = scmp.ne.s32.totalorder %s24, %s27
      %p33 = scmp.eq.s32.totalorder %s14, 0
      %p34 = por %p32, %p33
      %p35 = scmp.ne.s32.totalorder %s24, %s27
      %p36 = scmp.eq.s32.totalorder %s19, 1
      %p37 = por %p35, %p36
      %p38 = scmp.ne.s32.totalorder %s27, %s28
      %p39 = scmp.eq.s32.totalorder %s19, 0
      %p40 = por %p38, %p39
      %p41 = scmp.ne.s32.totalorder %s27, %s28
      %p42 = scmp.eq.s32.totalorder %s20, 1
      %p43 = por %p41, %p42
      %p45 = scmp.ne.s32.totalorder %s28, %s44
      %p46 = scmp.eq.s32.totalorder %s20, 0
      %p47 = por %p45, %p46
      %s49 = sadd.s32 %s48, 1
      %p52 = scmp.eq.s32.totalorder %s14, 1
      %p53 = scmp.ne.s32.totalorder %s48, %s50
      %p54 = scmp.eq.s32.totalorder %s14, 0
      %p55 = por %p53, %p54
      %p56 = scmp.ne.s32.totalorder %s48, %s50
      %p57 = scmp.eq.s32.totalorder %s19, 1
      %p58 = por %p56, %p57
      %p59 = scmp.ne.s32.totalorder %s50, %s51
      %p60 = scmp.eq.s32.totalorder %s19, 0
      %p61 = por %p59, %p60
      %p62 = scmp.ne.s32.totalorder %s50, %s51
      %p63 = scmp.eq.s32.totalorder %s20, 1
      %p64 = por %p62, %p63
      %p66 = scmp.ne.s32.totalorder %s51, %s65
      %p67 = scmp.eq.s32.totalorder %s20, 0
      %p68 = por %p66, %p67
      %s70 = sadd.s32 %s69, 1
      %p73 = scmp.eq.s32.totalorder %s14, 1
      %p74 = scmp.ne.s32.totalorder %s69, %s71
      %p75 = scmp.eq.s32.totalorder %s14, 0
      %p76 = por %p74, %p75
      %p77 = scmp.ne.s32.totalorder %s69, %s71
      %p78 = scmp.eq.s32.totalorder %s19, 1
      %p79 = por %p77, %p78
      %p80 = scmp.ne.s32.totalorder %s71, %s72
      %p81 = scmp.eq.s32.totalorder %s19, 0
      %p82 = por %p80, %p81
      %p83 = scmp.ne.s32.totalorder %s71, %s72
      %p84 = scmp.eq.s32.totalorder %s20, 1
      %p85 = por %p83, %p84
      %p87 = scmp.ne.s32.totalorder %s72, %s86
      %p88 = scmp.eq.s32.totalorder %s20, 0
      %p89 = por %p87, %p88
      %s91 = sadd.s32 %s90, 1
      %p94 = scmp.eq.s32.totalorder %s14, 1
      %p95 = scmp.ne.s32.totalorder %s90, %s92
      %p96 = scmp.eq.s32.totalorder %s14, 0
      %p97 = por %p95, %p96
      %p98 = scmp.ne.s32.totalorder %s90, %s92
      %p99 = scmp.eq.s32.totalorder %s19, 1
      %p100 = por %p98, %p99
      %p101 = scmp.ne.s32.totalorder %s92, %s93
      %p102 = scmp.eq.s32.totalorder %s19, 0
      %p103 = por %p101, %p102
      %p104 = scmp.ne.s32.totalorder %s92, %s93
      %p105 = scmp.eq.s32.totalorder %s20, 1
      %p106 = por %p104, %p105
      %p108 = scmp.ne.s32.totalorder %s93, %s107
      %p109 = scmp.eq.s32.totalorder %s20, 0
      %p110 = por %p108, %p109
      %s112 = sadd.s32 %s111, 1
      %p115 = scmp.eq.s32.totalorder %s14, 1
      %p116 = scmp.ne.s32.totalorder %s111, %s113
      %p117 = scmp.eq.s32.totalorder %s14, 0
      %p118 = por %p116, %p117
      %p119 = scmp.ne.s32.totalorder %s111, %s113
      %p120 = scmp.eq.s32.totalorder %s19, 1
      %p121 = por %p119, %p120
      %p122 = scmp.ne.s32.totalorder %s113, %s114
      %p123 = scmp.eq.s32.totalorder %s19, 0
      %p124 = por %p122, %p123
      %p125 = scmp.ne.s32.totalorder %s113, %s114
      %p126 = scmp.eq.s32.totalorder %s20, 1
      %p127 = por %p125, %p126
      %p129 = scmp.ne.s32.totalorder %s114, %s128
      %p130 = scmp.eq.s32.totalorder %s20, 0
      %p131 = por %p129, %p130
      %s132 = ssub.s32 %s14, %s21
      %p133 = scmp.eq.s32.totalorder %s132, 0
      %s135 = sadd.s32 %s134, 1
      %s136 = scalar_select %p133, %s134, %s135
      %p139 = pneg %p133
      %p140 = scmp.eq.s32.totalorder %s14, 1
      %p141 = por %p139, %p140
      %p142 = scmp.ne.s32.totalorder %s134, %s137
      %p143 = scmp.eq.s32.totalorder %s14, 0
      %p144 = por %p142, %p143
      %p145 = scmp.ne.s32.totalorder %s134, %s137
      %p146 = scmp.eq.s32.totalorder %s19, 1
      %p147 = por %p145, %p146
      %p148 = scmp.ne.s32.totalorder %s137, %s138
      %p149 = scmp.eq.s32.totalorder %s19, 0
      %p150 = por %p148, %p149
      %p151 = scmp.ne.s32.totalorder %s137, %s138
      %p152 = scmp.eq.s32.totalorder %s20, 1
      %p153 = por %p151, %p152
      %p155 = scmp.ne.s32.totalorder %s138, %s154
      %p156 = scmp.eq.s32.totalorder %s20, 0
      %p157 = por %p155, %p156
      %p158 = scmp.le.s32.totalorder 1, %s14
      %p159 = scmp.lt.s32.totalorder %s14, 3
      %p160 = pnand %p158, %p159
      %p161 = pneg %p160
      // Predicated region
      $region9: #{tpu_custom_call.1} parent=5 // pred_check
        _
      $region10: #{tpu_custom_call.1} parent=5 // pred_check_branch
        %163 = sbr.rel (%p160) target = $region12
      $region11: #{tpu_custom_call.1} parent=5 // pred_region
        %s164 = ssub.s32 %s14, 1
        // Predicated region
        $region13: #{tpu_custom_call.1} parent=11 // pred_check
          %p165 = pneg %p61
        $region14: #{tpu_custom_call.1} parent=11 // pred_check_branch
          %167 = sbr.rel (%p165) target = $region16
        $region15: #{tpu_custom_call.1} parent=11 // pred_region
          _
        $region16: #{tpu_custom_call.1} parent=11 // pred_fallthru
          _
        // Predicated region
        $region17: #{tpu_custom_call.1} parent=11 // pred_check
          %p168 = pneg %p82
        $region18: #{tpu_custom_call.1} parent=11 // pred_check_branch
          %170 = sbr.rel (%p168) target = $region20
        $region19: #{tpu_custom_call.1} parent=11 // pred_region
          _
        $region20: #{tpu_custom_call.1} parent=11 // pred_fallthru
          _
        // Predicated region
        $region21: #{tpu_custom_call.1} parent=11 // pred_check
          %p171 = pneg %p103
        $region22: #{tpu_custom_call.1} parent=11 // pred_check_branch
          %173 = sbr.rel (%p171) target = $region24
        $region23: #{tpu_custom_call.1} parent=11 // pred_region
          _
        $region24: #{tpu_custom_call.1} parent=11 // pred_fallthru
          _
        // Predicated region
        $region25: #{tpu_custom_call.1} parent=11 // pred_check
          %p174 = pneg %p124
        $region26: #{tpu_custom_call.1} parent=11 // pred_check_branch
          %176 = sbr.rel (%p174) target = $region28
        $region27: #{tpu_custom_call.1} parent=11 // pred_region
          _
        $region28: #{tpu_custom_call.1} parent=11 // pred_fallthru
          _
      $region12: #{tpu_custom_call.1} parent=5 // pred_fallthru
        _
      %p177 = scmp.lt.s32.totalorder %s14, 2
      // Predicated region
      $region29: #{tpu_custom_call.1} parent=5 // pred_check
        %p178 = pneg %p177
      $region30: #{tpu_custom_call.1} parent=5 // pred_check_branch
        %180 = sbr.rel (%p178) target = $region32
      $region31: #{tpu_custom_call.1} parent=5 // pred_region
        // Predicated region
        $region33: #{tpu_custom_call.1} parent=31 // pred_check
          %p181 = pneg %p34
        $region34: #{tpu_custom_call.1} parent=31 // pred_check_branch
          %183 = sbr.rel (%p181) target = $region36
        $region35: #{tpu_custom_call.1} parent=31 // pred_region
          %s184 = smul.u32 2, %s14
          %p185 = scmp.lt.s32.totalorder %s184, 3
          %s186 = scalar_select %p185, %s184, 3
          %s187 = smul.addr %s186, 4
          %s188 = scalar_lea.vmem %s0, %s187
          %s189 = smul.u32 2, %s14
        $region36: #{tpu_custom_call.1} parent=31 // pred_fallthru
          _
      $region32: #{tpu_custom_call.1} parent=5 // pred_fallthru
        _
      %p190 = scmp.le.s32.totalorder 1, %s14
      %p191 = scmp.lt.s32.totalorder %s14, 3
      %p192 = pnand %p190, %p191
      %p193 = pneg %p192
      // Predicated region
      $region37: #{tpu_custom_call.1} parent=5 // pred_check
        _
      $region38: #{tpu_custom_call.1} parent=5 // pred_check_branch
        %195 = sbr.rel (%p192) target = $region40
      $region39: #{tpu_custom_call.1} parent=5 // pred_region
        %s196 = ssub.s32 %s14, 1
        %s197 = smul.u32 2, %s19
        %p198 = scmp.lt.s32.totalorder %s197, 3
        %s199 = scalar_select %p198, %s197, 3
        %s200 = smul.addr %s199, 4
        %s201 = scalar_lea.vmem %s0, %s200
        %p202 = pneg %p40
        %p203 = pneg %p37
        %p204 = pneg %p61
        %p205 = pneg %p58
        %p206 = pneg %p82
        %p207 = pneg %p79
        %p208 = pneg %p103
        %p209 = pneg %p100
        %p210 = pneg %p124
        %p211 = pneg %p121
        %p212 = pneg %p150
        %p213 = pneg %p147
        %s214 = sand.u32 %s137, 1
        %s215 = scalar_lea.sflag [#allocation3], %s214
        %s216 = sand.u32 %s137, 1
        %s217 = smul.addr %s216, 2
        %s218 = scalar_lea.vmem [#allocation2], %s217
        %s219 = smul.u32 2, %s19
        %p220 = scmp.lt.s32.totalorder %s219, 3
        %s221 = scalar_select %p220, %s219, 3
        %s222 = smul.addr %s221, 4
        %s223 = scalar_lea.vmem %s0, %s222
        %s224 = smul.u32 2, %s19
        %s225 = smul.u32 2, %s19
        %v227 = vld [vmem:[%s223] sm:$0xff]
        %v228 = vcombine.high %v227, %v227
        %v231 = vlaneseq
        %v232 = vshrl.u32 %v231, 7
        %v233 = vadd.s32 %v232, 8
        %v234 = vadd.s32 %v232, 16
        %v235 = vadd.s32 %v232, 24
        %v236 = vadd.s32 %v232, 32
        %v237 = vadd.s32 %v232, 40
        %v238 = vadd.s32 %v232, 48
        %v239 = vadd.s32 %v232, 56
        %v240 = vadd.s32 %v232, 64
        %v241 = vadd.s32 %v232, 72
        %v242 = vadd.s32 %v232, 80
        %v243 = vadd.s32 %v232, 88
        %v244 = vadd.s32 %v232, 96
        %v245 = vadd.s32 %v232, 104
        %v246 = vadd.s32 %v232, 112
        %v247 = vadd.s32 %v232, 120
        %v248 = vlaneseq
        %v249 = vshrl.u32 %v248, 7
        %v250 = vsub.s32 0, %v249
        %v251 = vrot.slane %v227, %v250
        %v252 = vlaneseq
        %v253 = vshrl.u32 %v252, 7
        %v254 = vsub.s32 4, %v253
        %v255 = vrot.slane %v227, %v254
        %v256 = vlaneseq
        %v257 = vshrl.u32 %v256, 7
        %v258 = vsub.s32 0, %v257
        %v259 = vrot.slane %v251, %v258
        %v260 = vlaneseq
        %v261 = vshrl.u32 %v260, 7
        %v262 = vsub.s32 0, %v261
        %v263 = vrot.slane %v255, %v262
        %vm264 = vcmp.eq.s32.totalorder %v232, %v259
        %vm265 = vcmp.eq.s32.totalorder %v232, %v263
        %vm266 = vcmp.eq.s32.totalorder %v233, %v259
        %vm267 = vcmp.eq.s32.totalorder %v233, %v263
        %vm268 = vcmp.eq.s32.totalorder %v234, %v259
        %vm269 = vcmp.eq.s32.totalorder %v234, %v263
        %vm270 = vcmp.eq.s32.totalorder %v235, %v259
        %vm271 = vcmp.eq.s32.totalorder %v235, %v263
        %vm272 = vcmp.eq.s32.totalorder %v236, %v259
        %vm273 = vcmp.eq.s32.totalorder %v236, %v263
        %vm274 = vcmp.eq.s32.totalorder %v237, %v259
        %vm275 = vcmp.eq.s32.totalorder %v237, %v263
        %vm276 = vcmp.eq.s32.totalorder %v238, %v259
        %vm277 = vcmp.eq.s32.totalorder %v238, %v263
        %vm278 = vcmp.eq.s32.totalorder %v239, %v259
        %vm279 = vcmp.eq.s32.totalorder %v239, %v263
        %vm280 = vcmp.eq.s32.totalorder %v240, %v259
        %vm281 = vcmp.eq.s32.totalorder %v240, %v263
        %vm282 = vcmp.eq.s32.totalorder %v241, %v259
        %vm283 = vcmp.eq.s32.totalorder %v241, %v263
        %vm284 = vcmp.eq.s32.totalorder %v242, %v259
        %vm285 = vcmp.eq.s32.totalorder %v242, %v263
        %vm286 = vcmp.eq.s32.totalorder %v243, %v259
        %vm287 = vcmp.eq.s32.totalorder %v243, %v263
        %vm288 = vcmp.eq.s32.totalorder %v244, %v259
        %vm289 = vcmp.eq.s32.totalorder %v244, %v263
        %vm290 = vcmp.eq.s32.totalorder %v245, %v259
        %vm291 = vcmp.eq.s32.totalorder %v245, %v263
        %vm292 = vcmp.eq.s32.totalorder %v246, %v259
        %vm293 = vcmp.eq.s32.totalorder %v246, %v263
        %vm294 = vcmp.eq.s32.totalorder %v247, %v259
        %vm295 = vcmp.eq.s32.totalorder %v247, %v263
        %v296 = vsel %vm264, 1.0, 0.0
        %v297 = vsel %vm265, 1.0, 0.0
        %v298 = vsel %vm266, 1.0, 0.0
        %v299 = vsel %vm267, 1.0, 0.0
        %v300 = vsel %vm268, 1.0, 0.0
        %v301 = vsel %vm269, 1.0, 0.0
        %v302 = vsel %vm270, 1.0, 0.0
        %v303 = vsel %vm271, 1.0, 0.0
        %v304 = vsel %vm272, 1.0, 0.0
        %v305 = vsel %vm273, 1.0, 0.0
        %v306 = vsel %vm274, 1.0, 0.0
        %v307 = vsel %vm275, 1.0, 0.0
        %v308 = vsel %vm276, 1.0, 0.0
        %v309 = vsel %vm277, 1.0, 0.0
        %v310 = vsel %vm278, 1.0, 0.0
        %v311 = vsel %vm279, 1.0, 0.0
        %v312 = vsel %vm280, 1.0, 0.0
        %v313 = vsel %vm281, 1.0, 0.0
        %v314 = vsel %vm282, 1.0, 0.0
        %v315 = vsel %vm283, 1.0, 0.0
        %v316 = vsel %vm284, 1.0, 0.0
        %v317 = vsel %vm285, 1.0, 0.0
        %v318 = vsel %vm286, 1.0, 0.0
        %v319 = vsel %vm287, 1.0, 0.0
        %v320 = vsel %vm288, 1.0, 0.0
        %v321 = vsel %vm289, 1.0, 0.0
        %v322 = vsel %vm290, 1.0, 0.0
        %v323 = vsel %vm291, 1.0, 0.0
        %v324 = vsel %vm292, 1.0, 0.0
        %v325 = vsel %vm293, 1.0, 0.0
        %v326 = vsel %vm294, 1.0, 0.0
        %v327 = vsel %vm295, 1.0, 0.0
        %v328 = vpack.c.bf16 %v298, %v296
        %v329 = vpack.c.bf16 %v299, %v297
        %v330 = vpack.c.bf16 %v302, %v300
        %v331 = vpack.c.bf16 %v303, %v301
        %v332 = vpack.c.bf16 %v306, %v304
        %v333 = vpack.c.bf16 %v307, %v305
        %v334 = vpack.c.bf16 %v310, %v308
        %v335 = vpack.c.bf16 %v311, %v309
        %v336 = vpack.c.bf16 %v314, %v312
        %v337 = vpack.c.bf16 %v315, %v313
        %v338 = vpack.c.bf16 %v318, %v316
        %v339 = vpack.c.bf16 %v319, %v317
        %v340 = vpack.c.bf16 %v322, %v320
        %v341 = vpack.c.bf16 %v323, %v321
        %v342 = vpack.c.bf16 %v326, %v324
        %v343 = vpack.c.bf16 %v327, %v325
        %v344 = vld [vmem:[%s1] sm:$0xf]
        %v345 = vld [vmem:[%s1 + $0x4] sm:$0xf]
        %v346 = vld [vmem:[%s1 + $0x8] sm:$0xf]
        %v347 = vld [vmem:[%s1 + $0xc] sm:$0xf]
        %v348 = vld [vmem:[%s1 + $0x10] sm:$0xf]
        %v349 = vld [vmem:[%s1 + $0x14] sm:$0xf]
        %v350 = vld [vmem:[%s1 + $0x18] sm:$0xf]
        %v351 = vld [vmem:[%s1 + $0x1c] sm:$0xf]
        %v352 = vld [vmem:[%s1 + $0x20] sm:$0xf]
        %v353 = vld [vmem:[%s1 + $0x24] sm:$0xf]
        %v354 = vld [vmem:[%s1 + $0x28] sm:$0xf]
        %v355 = vld [vmem:[%s1 + $0x2c] sm:$0xf]
        %v356 = vld [vmem:[%s1 + $0x30] sm:$0xf]
        %v357 = vld [vmem:[%s1 + $0x34] sm:$0xf]
        %v358 = vld [vmem:[%s1 + $0x38] sm:$0xf]
        %v359 = vld [vmem:[%s1 + $0x3c] sm:$0xf]
        %v360 = vld [vmem:[%s2] sm:$0xff]
        %v361 = vld [vmem:[%s2 + $0x8] sm:$0xff]
        %v362 = vld [vmem:[%s2 + $0x10] sm:$0xff]
        %v363 = vld [vmem:[%s2 + $0x18] sm:$0xff]
        %v364 = vld [vmem:[%s2 + $0x20] sm:$0xff]
        %v365 = vld [vmem:[%s2 + $0x28] sm:$0xff]
        %v366 = vld [vmem:[%s2 + $0x30] sm:$0xff]
        %v367 = vld [vmem:[%s2 + $0x38] sm:$0xff]
        %v368 = vld [vmem:[%s2 + $0x40] sm:$0xff]
        %v369 = vld [vmem:[%s2 + $0x48] sm:$0xff]
        %v370 = vld [vmem:[%s2 + $0x50] sm:$0xff]
        %v371 = vld [vmem:[%s2 + $0x58] sm:$0xff]
        %v372 = vld [vmem:[%s2 + $0x60] sm:$0xff]
        %v373 = vld [vmem:[%s2 + $0x68] sm:$0xff]
        %v374 = vld [vmem:[%s2 + $0x70] sm:$0xff]
        %v375 = vld [vmem:[%s2 + $0x78] sm:$0xff]
        %377 = vset.pattern.permute.xlu0 0
        %378 = vperm.xlu0 %377, %v360
        %v379 = vpop.permute.xlu0 %378
        %382 = vset.pattern.permute.xlu0 0
        %383 = vperm.xlu0 %382, %v361
        %v384 = vpop.permute.xlu0 %383
        %387 = vset.pattern.permute.xlu0 0
        %388 = vperm.xlu0 %387, %v362
        %v389 = vpop.permute.xlu0 %388
        %392 = vset.pattern.permute.xlu0 0
        %393 = vperm.xlu0 %392, %v363
        %v394 = vpop.permute.xlu0 %393
        %397 = vset.pattern.permute.xlu0 0
        %398 = vperm.xlu0 %397, %v364
        %v399 = vpop.permute.xlu0 %398
        %402 = vset.pattern.permute.xlu0 0
        %403 = vperm.xlu0 %402, %v365
        %v404 = vpop.permute.xlu0 %403
        %407 = vset.pattern.permute.xlu0 0
        %408 = vperm.xlu0 %407, %v366
        %v409 = vpop.permute.xlu0 %408
        %412 = vset.pattern.permute.xlu0 0
        %413 = vperm.xlu0 %412, %v367
        %v414 = vpop.permute.xlu0 %413
        %417 = vset.pattern.permute.xlu0 0
        %418 = vperm.xlu0 %417, %v368
        %v419 = vpop.permute.xlu0 %418
        %422 = vset.pattern.permute.xlu0 0
        %423 = vperm.xlu0 %422, %v369
        %v424 = vpop.permute.xlu0 %423
        %427 = vset.pattern.permute.xlu0 0
        %428 = vperm.xlu0 %427, %v370
        %v429 = vpop.permute.xlu0 %428
        %432 = vset.pattern.permute.xlu0 0
        %433 = vperm.xlu0 %432, %v371
        %v434 = vpop.permute.xlu0 %433
        %437 = vset.pattern.permute.xlu0 0
        %438 = vperm.xlu0 %437, %v372
        %v439 = vpop.permute.xlu0 %438
        %442 = vset.pattern.permute.xlu0 0
        %443 = vperm.xlu0 %442, %v373
        %v444 = vpop.permute.xlu0 %443
        %447 = vset.pattern.permute.xlu0 0
        %448 = vperm.xlu0 %447, %v374
        %v449 = vpop.permute.xlu0 %448
        %452 = vset.pattern.permute.xlu0 0
        %453 = vperm.xlu0 %452, %v375
        %v454 = vpop.permute.xlu0 %453
        %v456 = vlaneseq
        %v457 = vshrl.u32 %v456, 7
        %v458 = vsub.s32 2, %v457
        %v459 = vrot.slane %v227, %v458
        %v460 = vlaneseq
        %v461 = vshrl.u32 %v460, 7
        %v462 = vsub.s32 2, %v461
        %v463 = vrot.slane %v228, %v462
        %v464 = vmul.f32 %v379, %v459
        %v465 = vmul.f32 %v379, %v463
        %v466 = vmul.f32 %v384, %v459
        %v467 = vmul.f32 %v384, %v463
        %v468 = vmul.f32 %v389, %v459
        %v469 = vmul.f32 %v389, %v463
        %v470 = vmul.f32 %v394, %v459
        %v471 = vmul.f32 %v394, %v463
        %v472 = vmul.f32 %v399, %v459
        %v473 = vmul.f32 %v399, %v463
        %v474 = vmul.f32 %v404, %v459
        %v475 = vmul.f32 %v404, %v463
        %v476 = vmul.f32 %v409, %v459
        %v477 = vmul.f32 %v409, %v463
        %v478 = vmul.f32 %v414, %v459
        %v479 = vmul.f32 %v414, %v463
        %v480 = vmul.f32 %v419, %v459
        %v481 = vmul.f32 %v419, %v463
        %v482 = vmul.f32 %v424, %v459
        %v483 = vmul.f32 %v424, %v463
        %v484 = vmul.f32 %v429, %v459
        %v485 = vmul.f32 %v429, %v463
        %v486 = vmul.f32 %v434, %v459
        %v487 = vmul.f32 %v434, %v463
        %v488 = vmul.f32 %v439, %v459
        %v489 = vmul.f32 %v439, %v463
        %v490 = vmul.f32 %v444, %v459
        %v491 = vmul.f32 %v444, %v463
        %v492 = vmul.f32 %v449, %v459
        %v493 = vmul.f32 %v449, %v463
        %v494 = vmul.f32 %v454, %v459
        %v495 = vmul.f32 %v454, %v463
        %v512 = vunpack.c.l.b16 %v344
        %v513 = vunpack.c.l.b16 %v345
        %v514 = vunpack.c.l.b16 %v346
        %v515 = vunpack.c.l.b16 %v347
        %v516 = vunpack.c.l.b16 %v348
        %v517 = vunpack.c.l.b16 %v349
        %v518 = vunpack.c.l.b16 %v350
        %v519 = vunpack.c.l.b16 %v351
        %v520 = vunpack.c.l.b16 %v352
        %v521 = vunpack.c.l.b16 %v353
        %v522 = vunpack.c.l.b16 %v354
        %v523 = vunpack.c.l.b16 %v355
        %v524 = vunpack.c.l.b16 %v356
        %v525 = vunpack.c.l.b16 %v357
        %v526 = vunpack.c.l.b16 %v358
        %v527 = vunpack.c.l.b16 %v359
        %v528 = vpack.c.b16 %v513, %v512
        %v529 = vpack.c.b16 %v515, %v514
        %v530 = vpack.c.b16 %v517, %v516
        %v531 = vpack.c.b16 %v519, %v518
        %v532 = vpack.c.b16 %v521, %v520
        %v533 = vpack.c.b16 %v523, %v522
        %v534 = vpack.c.b16 %v525, %v524
        %v535 = vpack.c.b16 %v527, %v526
        %544 = vmatprep.subr.bf16.mxu0 %v329
        %545 = vmatpush1.bf16.msra.mxu0 %v328
        %546 = vmatprep.subr.bf16.mxu0 %v331
        %547 = vmatpush1.bf16.msra.mxu0 %v330
        %548 = vmatprep.subr.bf16.mxu0 %v333
        %549 = vmatpush1.bf16.msra.mxu0 %v332
        %550 = vmatprep.subr.bf16.mxu0 %v335
        %551 = vmatpush1.bf16.msra.mxu0 %v334
        %552 = vmatprep.subr.bf16.mxu0 %v337
        %553 = vmatpush1.bf16.msra.mxu0 %v336
        %554 = vmatprep.subr.bf16.mxu0 %v339
        %555 = vmatpush1.bf16.msra.mxu0 %v338
        %556 = vmatprep.subr.bf16.mxu0 %v341
        %557 = vmatpush1.bf16.msra.mxu0 %v340
        %558 = vmatprep.subr.bf16.mxu0 %v343
        %559 = vmatpush1.bf16.msra.mxu0 %v342
        %560 = vmatprep.subr.bf16.mxu0 0
        %561 = vmatpush1.bf16.msra.mxu0 0
        %562 = vmatprep.subr.bf16.mxu0 0
        %563 = vmatpush1.bf16.msra.mxu0 0
        %564 = vmatprep.subr.bf16.mxu0 0
        %565 = vmatpush1.bf16.msra.mxu0 0
        %566 = vmatprep.subr.bf16.mxu0 0
        %567 = vmatpush1.bf16.msra.mxu0 0
        %568 = vmatprep.subr.bf16.mxu0 0
        %569 = vmatpush1.bf16.msra.mxu0 0
        %570 = vmatprep.subr.bf16.mxu0 0
        %571 = vmatpush1.bf16.msra.mxu0 0
        %572 = vmatprep.subr.bf16.mxu0 0
        %573 = vmatpush1.bf16.msra.mxu0 0
        %574 = vmatprep.subr.bf16.mxu0 0
        %575 = vmatpush1.bf16.msra.mxu0 0
        %576 = vmatprep.mubr.bf16.mxu0 0
        %577 = vmatmul.mubr.bf16.gmra.mrb[0].mxu0 %v528
        %v578 = vpop.f32.mrb[0].mxu0
        %v579 = vadd.f32 %v464, %v578
        %v580 = vpop.f32.mrb[0].mxu0
        %v581 = vadd.f32 %v465, %v580
        %v582 = vpop.f32.mrb[0].mxu0
        %v583 = vadd.f32 %v466, %v582
        %v584 = vpop.f32.mrb[0].mxu0
        %v585 = vadd.f32 %v467, %v584
        %586 = vmatprep.mubr.bf16.mxu0 0
        %587 = vmatmul.mubr.bf16.gmra.mrb[0].mxu0 %v529
        %v588 = vpop.f32.mrb[0].mxu0
        %v589 = vadd.f32 %v468, %v588
        %v590 = vpop.f32.mrb[0].mxu0
        %v591 = vadd.f32 %v469, %v590
        %v592 = vpop.f32.mrb[0].mxu0
        %v593 = vadd.f32 %v470, %v592
        %v594 = vpop.f32.mrb[0].mxu0
        %v595 = vadd.f32 %v471, %v594
        %596 = vmatprep.mubr.bf16.mxu0 0
        %597 = vmatmul.mubr.bf16.gmra.mrb[0].mxu0 %v530
        %v598 = vpop.f32.mrb[0].mxu0
        %v599 = vadd.f32 %v472, %v598
        %v600 = vpop.f32.mrb[0].mxu0
        %v601 = vadd.f32 %v473, %v600
        %v602 = vpop.f32.mrb[0].mxu0
        %v603 = vadd.f32 %v474, %v602
        %v604 = vpop.f32.mrb[0].mxu0
        %v605 = vadd.f32 %v475, %v604
        %606 = vmatprep.mubr.bf16.mxu0 0
        %607 = vmatmul.mubr.bf16.gmra.mrb[0].mxu0 %v531
        %v608 = vpop.f32.mrb[0].mxu0
        %v609 = vadd.f32 %v476, %v608
        %v610 = vpop.f32.mrb[0].mxu0
        %v611 = vadd.f32 %v477, %v610
        %v612 = vpop.f32.mrb[0].mxu0
        %v613 = vadd.f32 %v478, %v612
        %v614 = vpop.f32.mrb[0].mxu0
        %v615 = vadd.f32 %v479, %v614
        %616 = vmatprep.mubr.bf16.mxu0 0
        %617 = vmatmul.mubr.bf16.gmra.mrb[0].mxu0 %v532
        %v618 = vpop.f32.mrb[0].mxu0
        %v619 = vadd.f32 %v480, %v618
        %v620 = vpop.f32.mrb[0].mxu0
        %v621 = vadd.f32 %v481, %v620
        %v622 = vpop.f32.mrb[0].mxu0
        %v623 = vadd.f32 %v482, %v622
        %v624 = vpop.f32.mrb[0].mxu0
        %v625 = vadd.f32 %v483, %v624
        %626 = vmatprep.mubr.bf16.mxu0 0
        %627 = vmatmul.mubr.bf16.gmra.mrb[0].mxu0 %v533
        %v628 = vpop.f32.mrb[0].mxu0
        %v629 = vadd.f32 %v484, %v628
        %v630 = vpop.f32.mrb[0].mxu0
        %v631 = vadd.f32 %v485, %v630
        %v632 = vpop.f32.mrb[0].mxu0
        %v633 = vadd.f32 %v486, %v632
        %v634 = vpop.f32.mrb[0].mxu0
        %v635 = vadd.f32 %v487, %v634
        %636 = vmatprep.mubr.bf16.mxu0 0
        %637 = vmatmul.mubr.bf16.gmra.mrb[0].mxu0 %v534
        %v638 = vpop.f32.mrb[0].mxu0
        %v639 = vadd.f32 %v488, %v638
        %v640 = vpop.f32.mrb[0].mxu0
        %v641 = vadd.f32 %v489, %v640
        %v642 = vpop.f32.mrb[0].mxu0
        %v643 = vadd.f32 %v490, %v642
        %v644 = vpop.f32.mrb[0].mxu0
        %v645 = vadd.f32 %v491, %v644
        %646 = vmatprep.mubr.bf16.mxu0 0
        %647 = vmatmul.mubr.bf16.gmra.mrb[0].mxu0 %v535
        %v648 = vpop.f32.mrb[0].mxu0
        %v649 = vadd.f32 %v492, %v648
        %v650 = vpop.f32.mrb[0].mxu0
        %v651 = vadd.f32 %v493, %v650
        %v652 = vpop.f32.mrb[0].mxu0
        %v653 = vadd.f32 %v494, %v652
        %v654 = vpop.f32.mrb[0].mxu0
        %v655 = vadd.f32 %v495, %v654
        %656 = vdwg.mxu0
        %v657 = vld [vmem:[%s3] sm:$0xf]
        %v658 = vld [vmem:[%s3 + $0x4] sm:$0xf]
        %v659 = vld [vmem:[%s3 + $0x8] sm:$0xf]
        %v660 = vld [vmem:[%s3 + $0xc] sm:$0xf]
        %v661 = vld [vmem:[%s3 + $0x10] sm:$0xf]
        %v662 = vld [vmem:[%s3 + $0x14] sm:$0xf]
        %v663 = vld [vmem:[%s3 + $0x18] sm:$0xf]
        %v664 = vld [vmem:[%s3 + $0x1c] sm:$0xf]
        %v665 = vld [vmem:[%s3 + $0x20] sm:$0xf]
        %v666 = vld [vmem:[%s3 + $0x24] sm:$0xf]
        %v667 = vld [vmem:[%s3 + $0x28] sm:$0xf]
        %v668 = vld [vmem:[%s3 + $0x2c] sm:$0xf]
        %v669 = vld [vmem:[%s3 + $0x30] sm:$0xf]
        %v670 = vld [vmem:[%s3 + $0x34] sm:$0xf]
        %v671 = vld [vmem:[%s3 + $0x38] sm:$0xf]
        %v672 = vld [vmem:[%s3 + $0x3c] sm:$0xf]
        %v673 = vpack.c.bf16 %v583, %v579
        %v674 = vpack.c.bf16 %v585, %v581
        %v675 = vpack.c.bf16 %v593, %v589
        %v676 = vpack.c.bf16 %v595, %v591
        %v677 = vpack.c.bf16 %v603, %v599
        %v678 = vpack.c.bf16 %v605, %v601
        %v679 = vpack.c.bf16 %v613, %v609
        %v680 = vpack.c.bf16 %v615, %v611
        %v681 = vpack.c.bf16 %v623, %v619
        %v682 = vpack.c.bf16 %v625, %v621
        %v683 = vpack.c.bf16 %v633, %v629
        %v684 = vpack.c.bf16 %v635, %v631
        %v685 = vpack.c.bf16 %v643, %v639
        %v686 = vpack.c.bf16 %v645, %v641
        %v687 = vpack.c.bf16 %v653, %v649
        %v688 = vpack.c.bf16 %v655, %v651
        %v689 = vld [vmem:[%s4] sm:$0xff]
        %v690 = vld [vmem:[%s4 + $0x8] sm:$0xff]
        %v691 = vld [vmem:[%s4 + $0x10] sm:$0xff]
        %v692 = vld [vmem:[%s4 + $0x18] sm:$0xff]
        %v693 = vld [vmem:[%s4 + $0x20] sm:$0xff]
        %v694 = vld [vmem:[%s4 + $0x28] sm:$0xff]
        %v695 = vld [vmem:[%s4 + $0x30] sm:$0xff]
        %v696 = vld [vmem:[%s4 + $0x38] sm:$0xff]
        %v697 = vld [vmem:[%s4 + $0x40] sm:$0xff]
        %v698 = vld [vmem:[%s4 + $0x48] sm:$0xff]
        %v699 = vld [vmem:[%s4 + $0x50] sm:$0xff]
        %v700 = vld [vmem:[%s4 + $0x58] sm:$0xff]
        %v701 = vld [vmem:[%s4 + $0x60] sm:$0xff]
        %v702 = vld [vmem:[%s4 + $0x68] sm:$0xff]
        %v703 = vld [vmem:[%s4 + $0x70] sm:$0xff]
        %v704 = vld [vmem:[%s4 + $0x78] sm:$0xff]
        %706 = vset.pattern.permute.xlu0 0
        %707 = vperm.xlu0 %706, %v689
        %v708 = vpop.permute.xlu0 %707
        %711 = vset.pattern.permute.xlu0 0
        %712 = vperm.xlu0 %711, %v690
        %v713 = vpop.permute.xlu0 %712
        %716 = vset.pattern.permute.xlu0 0
        %717 = vperm.xlu0 %716, %v691
        %v718 = vpop.permute.xlu0 %717
        %721 = vset.pattern.permute.xlu0 0
        %722 = vperm.xlu0 %721, %v692
        %v723 = vpop.permute.xlu0 %722
        %726 = vset.pattern.permute.xlu0 0
        %727 = vperm.xlu0 %726, %v693
        %v728 = vpop.permute.xlu0 %727
        %731 = vset.pattern.permute.xlu0 0
        %732 = vperm.xlu0 %731, %v694
        %v733 = vpop.permute.xlu0 %732
        %736 = vset.pattern.permute.xlu0 0
        %737 = vperm.xlu0 %736, %v695
        %v738 = vpop.permute.xlu0 %737
        %741 = vset.pattern.permute.xlu0 0
        %742 = vperm.xlu0 %741, %v696
        %v743 = vpop.permute.xlu0 %742
        %746 = vset.pattern.permute.xlu0 0
        %747 = vperm.xlu0 %746, %v697
        %v748 = vpop.permute.xlu0 %747
        %751 = vset.pattern.permute.xlu0 0
        %752 = vperm.xlu0 %751, %v698
        %v753 = vpop.permute.xlu0 %752
        %756 = vset.pattern.permute.xlu0 0
        %757 = vperm.xlu0 %756, %v699
        %v758 = vpop.permute.xlu0 %757
        %761 = vset.pattern.permute.xlu0 0
        %762 = vperm.xlu0 %761, %v700
        %v763 = vpop.permute.xlu0 %762
        %766 = vset.pattern.permute.xlu0 0
        %767 = vperm.xlu0 %766, %v701
        %v768 = vpop.permute.xlu0 %767
        %771 = vset.pattern.permute.xlu0 0
        %772 = vperm.xlu0 %771, %v702
        %v773 = vpop.permute.xlu0 %772
        %776 = vset.pattern.permute.xlu0 0
        %777 = vperm.xlu0 %776, %v703
        %v778 = vpop.permute.xlu0 %777
        %781 = vset.pattern.permute.xlu0 0
        %782 = vperm.xlu0 %781, %v704
        %v783 = vpop.permute.xlu0 %782
        %v801 = vunpack.c.l.b16 %v657
        %v802 = vunpack.c.l.b16 %v658
        %v803 = vunpack.c.l.b16 %v659
        %v804 = vunpack.c.l.b16 %v660
        %v805 = vunpack.c.l.b16 %v661
        %v806 = vunpack.c.l.b16 %v662
        %v807 = vunpack.c.l.b16 %v663
        %v808 = vunpack.c.l.b16 %v664
        %v809 = vunpack.c.l.b16 %v665
        %v810 = vunpack.c.l.b16 %v666
        %v811 = vunpack.c.l.b16 %v667
        %v812 = vunpack.c.l.b16 %v668
        %v813 = vunpack.c.l.b16 %v669
        %v814 = vunpack.c.l.b16 %v670
        %v815 = vunpack.c.l.b16 %v671
        %v816 = vunpack.c.l.b16 %v672
        %v817 = vpack.c.b16 %v802, %v801
        %v818 = vpack.c.b16 %v804, %v803
        %v819 = vpack.c.b16 %v806, %v805
        %v820 = vpack.c.b16 %v808, %v807
        %v821 = vpack.c.b16 %v810, %v809
        %v822 = vpack.c.b16 %v812, %v811
        %v823 = vpack.c.b16 %v814, %v813
        %v824 = vpack.c.b16 %v816, %v815
        %833 = vmatprep.subr.bf16.mxu0 %v674
        %834 = vmatpush1.bf16.msra.mxu0 %v673
        %835 = vmatprep.subr.bf16.mxu0 %v676
        %836 = vmatpush1.bf16.msra.mxu0 %v675
        %837 = vmatprep.subr.bf16.mxu0 %v678
        %838 = vmatpush1.bf16.msra.mxu0 %v677
        %839 = vmatprep.subr.bf16.mxu0 %v680
        %840 = vmatpush1.bf16.msra.mxu0 %v679
        %841 = vmatprep.subr.bf16.mxu0 %v682
        %842 = vmatpush1.bf16.msra.mxu0 %v681
        %843 = vmatprep.subr.bf16.mxu0 %v684
        %844 = vmatpush1.bf16.msra.mxu0 %v683
        %845 = vmatprep.subr.bf16.mxu0 %v686
        %846 = vmatpush1.bf16.msra.mxu0 %v685
        %847 = vmatprep.subr.bf16.mxu0 %v688
        %848 = vmatpush1.bf16.msra.mxu0 %v687
        %849 = vmatprep.subr.bf16.mxu0 0
        %850 = vmatpush1.bf16.msra.mxu0 0
        %851 = vmatprep.subr.bf16.mxu0 0
        %852 = vmatpush1.bf16.msra.mxu0 0
        %853 = vmatprep.subr.bf16.mxu0 0
        %854 = vmatpush1.bf16.msra.mxu0 0
        %855 = vmatprep.subr.bf16.mxu0 0
        %856 = vmatpush1.bf16.msra.mxu0 0
        %857 = vmatprep.subr.bf16.mxu0 0
        %858 = vmatpush1.bf16.msra.mxu0 0
        %859 = vmatprep.subr.bf16.mxu0 0
        %860 = vmatpush1.bf16.msra.mxu0 0
        %861 = vmatprep.subr.bf16.mxu0 0
        %862 = vmatpush1.bf16.msra.mxu0 0
        %863 = vmatprep.subr.bf16.mxu0 0
        %864 = vmatpush1.bf16.msra.mxu0 0
        %865 = vmatprep.mubr.bf16.mxu0 0
        %866 = vmatmul.mubr.bf16.gmra.mrb[0].mxu0 %v817
        %v867 = vpop.f32.mrb[0].mxu0
        %v868 = vadd.f32 %v708, %v867
        %v869 = vpop.f32.mrb[0].mxu0
        %v870 = vadd.f32 %v708, %v869
        %v871 = vpop.f32.mrb[0].mxu0
        %v872 = vadd.f32 %v713, %v871
        %v873 = vpop.f32.mrb[0].mxu0
        %v874 = vadd.f32 %v713, %v873
        %875 = vmatprep.mubr.bf16.mxu0 0
        %876 = vmatmul.mubr.bf16.gmra.mrb[0].mxu0 %v818
        %v877 = vpop.f32.mrb[0].mxu0
        %v878 = vadd.f32 %v718, %v877
        %v879 = vpop.f32.mrb[0].mxu0
        %v880 = vadd.f32 %v718, %v879
        %v881 = vpop.f32.mrb[0].mxu0
        %v882 = vadd.f32 %v723, %v881
        %v883 = vpop.f32.mrb[0].mxu0
        %v884 = vadd.f32 %v723, %v883
        %885 = vmatprep.mubr.bf16.mxu0 0
        %886 = vmatmul.mubr.bf16.gmra.mrb[0].mxu0 %v819
        %v887 = vpop.f32.mrb[0].mxu0
        %v888 = vadd.f32 %v728, %v887
        %v889 = vpop.f32.mrb[0].mxu0
        %v890 = vadd.f32 %v728, %v889
        %v891 = vpop.f32.mrb[0].mxu0
        %v892 = vadd.f32 %v733, %v891
        %v893 = vpop.f32.mrb[0].mxu0
        %v894 = vadd.f32 %v733, %v893
        %895 = vmatprep.mubr.bf16.mxu0 0
        %896 = vmatmul.mubr.bf16.gmra.mrb[0].mxu0 %v820
        %v897 = vpop.f32.mrb[0].mxu0
        %v898 = vadd.f32 %v738, %v897
        %v899 = vpop.f32.mrb[0].mxu0
        %v900 = vadd.f32 %v738, %v899
        %v901 = vpop.f32.mrb[0].mxu0
        %v902 = vadd.f32 %v743, %v901
        %v903 = vpop.f32.mrb[0].mxu0
        %v904 = vadd.f32 %v743, %v903
        %905 = vmatprep.mubr.bf16.mxu0 0
        %906 = vmatmul.mubr.bf16.gmra.mrb[0].mxu0 %v821
        %v907 = vpop.f32.mrb[0].mxu0
        %v908 = vadd.f32 %v748, %v907
        %v909 = vpop.f32.mrb[0].mxu0
        %v910 = vadd.f32 %v748, %v909
        %v911 = vpop.f32.mrb[0].mxu0
        %v912 = vadd.f32 %v753, %v911
        %v913 = vpop.f32.mrb[0].mxu0
        %v914 = vadd.f32 %v753, %v913
        %915 = vmatprep.mubr.bf16.mxu0 0
        %916 = vmatmul.mubr.bf16.gmra.mrb[0].mxu0 %v822
        %v917 = vpop.f32.mrb[0].mxu0
        %v918 = vadd.f32 %v758, %v917
        %v919 = vpop.f32.mrb[0].mxu0
        %v920 = vadd.f32 %v758, %v919
        %v921 = vpop.f32.mrb[0].mxu0
        %v922 = vadd.f32 %v763, %v921
        %v923 = vpop.f32.mrb[0].mxu0
        %v924 = vadd.f32 %v763, %v923
        %925 = vmatprep.mubr.bf16.mxu0 0
        %926 = vmatmul.mubr.bf16.gmra.mrb[0].mxu0 %v823
        %v927 = vpop.f32.mrb[0].mxu0
        %v928 = vadd.f32 %v768, %v927
        %v929 = vpop.f32.mrb[0].mxu0
        %v930 = vadd.f32 %v768, %v929
        %v931 = vpop.f32.mrb[0].mxu0
        %v932 = vadd.f32 %v773, %v931
        %v933 = vpop.f32.mrb[0].mxu0
        %v934 = vadd.f32 %v773, %v933
        %935 = vmatprep.mubr.bf16.mxu0 0
        %936 = vmatmul.mubr.bf16.gmra.mrb[0].mxu0 %v824
        %v937 = vpop.f32.mrb[0].mxu0
        %v938 = vadd.f32 %v778, %v937
        %v939 = vpop.f32.mrb[0].mxu0
        %v940 = vadd.f32 %v778, %v939
        %v941 = vpop.f32.mrb[0].mxu0
        %v942 = vadd.f32 %v783, %v941
        %v943 = vpop.f32.mrb[0].mxu0
        %v944 = vadd.f32 %v783, %v943
        %945 = vdwg.mxu0
        %v946 = vmax.f32 %v868, %v878
        %v947 = vmax.f32 %v872, %v882
        %v948 = vmax.f32 %v946, %v888
        %v949 = vmax.f32 %v947, %v892
        %v950 = vmax.f32 %v948, %v898
        %v951 = vmax.f32 %v949, %v902
        %v952 = vmax.f32 %v950, %v908
        %v953 = vmax.f32 %v951, %v912
        %v954 = vmax.f32 %v952, %v918
        %v955 = vmax.f32 %v953, %v922
        %v956 = vmax.f32 %v954, %v928
        %v957 = vmax.f32 %v955, %v932
        %v958 = vmax.f32 %v956, %v938
        %v959 = vmax.f32 %v957, %v942
        %v960 = vmax.f32 %v958, %v959
        %v961 = vrot.slane %v960, 4
        %v962 = vmax.f32 %v960, %v961
        %v963 = vrot.slane %v962, 2
        %v964 = vmax.f32 %v962, %v963
        %v965 = vrot.slane %v964, 1
        %v966 = vmax.f32 %v964, %v965
        %v967 = vmax.f32 %v870, %v880
        %v968 = vmax.f32 %v874, %v884
        %v969 = vmax.f32 %v967, %v890
        %v970 = vmax.f32 %v968, %v894
        %v971 = vmax.f32 %v969, %v900
        %v972 = vmax.f32 %v970, %v904
        %v973 = vmax.f32 %v971, %v910
        %v974 = vmax.f32 %v972, %v914
        %v975 = vmax.f32 %v973, %v920
        %v976 = vmax.f32 %v974, %v924
        %v977 = vmax.f32 %v975, %v930
        %v978 = vmax.f32 %v976, %v934
        %v979 = vmax.f32 %v977, %v940
        %v980 = vmax.f32 %v978, %v944
        %v981 = vmax.f32 %v979, %v980
        %v982 = vrot.slane %v981, 4
        %v983 = vmax.f32 %v981, %v982
        %v984 = vrot.slane %v983, 2
        %v985 = vmax.f32 %v983, %v984
        %v986 = vrot.slane %v985, 1
        %v987 = vmax.f32 %v985, %v986
        %v988 = vsub.f32 %v868, %v966
        %v989 = vsub.f32 %v870, %v987
        %v990 = vsub.f32 %v872, %v966
        %v991 = vsub.f32 %v874, %v987
        %v992 = vsub.f32 %v878, %v966
        %v993 = vsub.f32 %v880, %v987
        %v994 = vsub.f32 %v882, %v966
        %v995 = vsub.f32 %v884, %v987
        %v996 = vsub.f32 %v888, %v966
        %v997 = vsub.f32 %v890, %v987
        %v998 = vsub.f32 %v892, %v966
        %v999 = vsub.f32 %v894, %v987
        %v1000 = vsub.f32 %v898, %v966
        %v1001 = vsub.f32 %v900, %v987
        %v1002 = vsub.f32 %v902, %v966
        %v1003 = vsub.f32 %v904, %v987
        %v1004 = vsub.f32 %v908, %v966
        %v1005 = vsub.f32 %v910, %v987
        %v1006 = vsub.f32 %v912, %v966
        %v1007 = vsub.f32 %v914, %v987
        %v1008 = vsub.f32 %v918, %v966
        %v1009 = vsub.f32 %v920, %v987
        %v1010 = vsub.f32 %v922, %v966
        %v1011 = vsub.f32 %v924, %v987
        %v1012 = vsub.f32 %v928, %v966
        %v1013 = vsub.f32 %v930, %v987
        %v1014 = vsub.f32 %v932, %v966
        %v1015 = vsub.f32 %v934, %v987
        %v1016 = vsub.f32 %v938, %v966
        %v1017 = vsub.f32 %v940, %v987
        %v1018 = vsub.f32 %v942, %v966
        %v1019 = vsub.f32 %v944, %v987
        %v1020 = vmul.f32 %v988, 1.442695
        %v1021 = vpow.pop %v1020
        %v1022 = vmul.f32 %v989, 1.442695
        %v1023 = vpow.pop %v1022
        %v1024 = vmul.f32 %v990, 1.442695
        %v1025 = vpow.pop %v1024
        %v1026 = vmul.f32 %v991, 1.442695
        %v1027 = vpow.pop %v1026
        %v1028 = vmul.f32 %v992, 1.442695
        %v1029 = vpow.pop %v1028
        %v1030 = vmul.f32 %v993, 1.442695
        %v1031 = vpow.pop %v1030
        %v1032 = vmul.f32 %v994, 1.442695
        %v1033 = vpow.pop %v1032
        %v1034 = vmul.f32 %v995, 1.442695
        %v1035 = vpow.pop %v1034
        %v1036 = vmul.f32 %v996, 1.442695
        %v1037 = vpow.pop %v1036
        %v1038 = vmul.f32 %v997, 1.442695
        %v1039 = vpow.pop %v1038
        %v1040 = vmul.f32 %v998, 1.442695
        %v1041 = vpow.pop %v1040
        %v1042 = vmul.f32 %v999, 1.442695
        %v1043 = vpow.pop %v1042
        %v1044 = vmul.f32 %v1000, 1.442695
        %v1045 = vpow.pop %v1044
        %v1046 = vmul.f32 %v1001, 1.442695
        %v1047 = vpow.pop %v1046
        %v1048 = vmul.f32 %v1002, 1.442695
        %v1049 = vpow.pop %v1048
        %v1050 = vmul.f32 %v1003, 1.442695
        %v1051 = vpow.pop %v1050
        %v1052 = vmul.f32 %v1004, 1.442695
        %v1053 = vpow.pop %v1052
        %v1054 = vmul.f32 %v1005, 1.442695
        %v1055 = vpow.pop %v1054
        %v1056 = vmul.f32 %v1006, 1.442695
        %v1057 = vpow.pop %v1056
        %v1058 = vmul.f32 %v1007, 1.442695
        %v1059 = vpow.pop %v1058
        %v1060 = vmul.f32 %v1008, 1.442695
        %v1061 = vpow.pop %v1060
        %v1062 = vmul.f32 %v1009, 1.442695
        %v1063 = vpow.pop %v1062
        %v1064 = vmul.f32 %v1010, 1.442695
        %v1065 = vpow.pop %v1064
        %v1066 = vmul.f32 %v1011, 1.442695
        %v1067 = vpow.pop %v1066
        %v1068 = vmul.f32 %v1012, 1.442695
        %v1069 = vpow.pop %v1068
        %v1070 = vmul.f32 %v1013, 1.442695
        %v1071 = vpow.pop %v1070
        %v1072 = vmul.f32 %v1014, 1.442695
        %v1073 = vpow.pop %v1072
        %v1074 = vmul.f32 %v1015, 1.442695
        %v1075 = vpow.pop %v1074
        %v1076 = vmul.f32 %v1016, 1.442695
        %v1077 = vpow.pop %v1076
        %v1078 = vmul.f32 %v1017, 1.442695
        %v1079 = vpow.pop %v1078
        %v1080 = vmul.f32 %v1018, 1.442695
        %v1081 = vpow.pop %v1080
        %v1082 = vmul.f32 %v1019, 1.442695
        %v1083 = vpow.pop %v1082
        %v1084 = vadd.f32 %v1021, %v1025
        %v1085 = vadd.f32 %v1084, %v1029
        %v1086 = vadd.f32 %v1085, %v1033
        %v1087 = vadd.f32 %v1086, %v1037
        %v1088 = vadd.f32 %v1087, %v1041
        %v1089 = vadd.f32 %v1088, %v1045
        %v1090 = vadd.f32 %v1089, %v1049
        %v1091 = vadd.f32 %v1090, %v1053
        %v1092 = vadd.f32 %v1091, %v1057
        %v1093 = vadd.f32 %v1092, %v1061
        %v1094 = vadd.f32 %v1093, %v1065
        %v1095 = vadd.f32 %v1094, %v1069
        %v1096 = vadd.f32 %v1095, %v1073
        %v1097 = vadd.f32 %v1096, %v1077
        %v1098 = vadd.f32 %v1097, %v1081
        %v1099 = vrot.slane %v1098, 4
        %v1100 = vadd.f32 %v1098, %v1099
        %v1101 = vrot.slane %v1100, 2
        %v1102 = vadd.f32 %v1100, %v1101
        %v1103 = vrot.slane %v1102, 1
        %v1104 = vadd.f32 %v1102, %v1103
        %v1105 = vadd.f32 %v1023, %v1027
        %v1106 = vadd.f32 %v1105, %v1031
        %v1107 = vadd.f32 %v1106, %v1035
        %v1108 = vadd.f32 %v1107, %v1039
        %v1109 = vadd.f32 %v1108, %v1043
        %v1110 = vadd.f32 %v1109, %v1047
        %v1111 = vadd.f32 %v1110, %v1051
        %v1112 = vadd.f32 %v1111, %v1055
        %v1113 = vadd.f32 %v1112, %v1059
        %v1114 = vadd.f32 %v1113, %v1063
        %v1115 = vadd.f32 %v1114, %v1067
        %v1116 = vadd.f32 %v1115, %v1071
        %v1117 = vadd.f32 %v1116, %v1075
        %v1118 = vadd.f32 %v1117, %v1079
        %v1119 = vadd.f32 %v1118, %v1083
        %v1120 = vrot.slane %v1119, 4
        %v1121 = vadd.f32 %v1119, %v1120
        %v1122 = vrot.slane %v1121, 2
        %v1123 = vadd.f32 %v1121, %v1122
        %v1124 = vrot.slane %v1123, 1
        %v1125 = vadd.f32 %v1123, %v1124
        %v1126 = vlog2.pop %v1104
        %v1127 = vmul.f32 %v1126, 0.6931472
        %v1128 = vlog2.pop %v1125
        %v1129 = vmul.f32 %v1128, 0.6931472
        %v1130 = vadd.f32 %v966, %v1127
        %v1131 = vadd.f32 %v987, %v1129
        %v1132 = vlaneseq
        %v1133 = vshrl.u32 %v1132, 7
        %v1134 = vsub.s32 1, %v1133
        %v1135 = vrot.slane %v227, %v1134
        %v1136 = vlaneseq
        %v1137 = vshrl.u32 %v1136, 7
        %v1138 = vsub.s32 5, %v1137
        %v1139 = vrot.slane %v227, %v1138
        %v1140 = vlaneseq
        %v1141 = vshrl.u32 %v1140, 7
        %v1142 = vsub.s32 1, %v1141
        %v1143 = vrot.slane %v1135, %v1142
        %v1144 = vlaneseq
        %v1145 = vshrl.u32 %v1144, 7
        %v1146 = vsub.s32 1, %v1145
        %v1147 = vrot.slane %v1139, %v1146
        %vm1148 = vcmp.eq.s32.totalorder %v232, %v1143
        %vm1149 = vcmp.eq.s32.totalorder %v232, %v1147
        %vm1150 = vcmp.eq.s32.totalorder %v233, %v1143
        %vm1151 = vcmp.eq.s32.totalorder %v233, %v1147
        %vm1152 = vcmp.eq.s32.totalorder %v234, %v1143
        %vm1153 = vcmp.eq.s32.totalorder %v234, %v1147
        %vm1154 = vcmp.eq.s32.totalorder %v235, %v1143
        %vm1155 = vcmp.eq.s32.totalorder %v235, %v1147
        %vm1156 = vcmp.eq.s32.totalorder %v236, %v1143
        %vm1157 = vcmp.eq.s32.totalorder %v236, %v1147
        %vm1158 = vcmp.eq.s32.totalorder %v237, %v1143
        %vm1159 = vcmp.eq.s32.totalorder %v237, %v1147
        %vm1160 = vcmp.eq.s32.totalorder %v238, %v1143
        %vm1161 = vcmp.eq.s32.totalorder %v238, %v1147
        %vm1162 = vcmp.eq.s32.totalorder %v239, %v1143
        %vm1163 = vcmp.eq.s32.totalorder %v239, %v1147
        %vm1164 = vcmp.eq.s32.totalorder %v240, %v1143
        %vm1165 = vcmp.eq.s32.totalorder %v240, %v1147
        %vm1166 = vcmp.eq.s32.totalorder %v241, %v1143
        %vm1167 = vcmp.eq.s32.totalorder %v241, %v1147
        %vm1168 = vcmp.eq.s32.totalorder %v242, %v1143
        %vm1169 = vcmp.eq.s32.totalorder %v242, %v1147
        %vm1170 = vcmp.eq.s32.totalorder %v243, %v1143
        %vm1171 = vcmp.eq.s32.totalorder %v243, %v1147
        %vm1172 = vcmp.eq.s32.totalorder %v244, %v1143
        %vm1173 = vcmp.eq.s32.totalorder %v244, %v1147
        %vm1174 = vcmp.eq.s32.totalorder %v245, %v1143
        %vm1175 = vcmp.eq.s32.totalorder %v245, %v1147
        %vm1176 = vcmp.eq.s32.totalorder %v246, %v1143
        %vm1177 = vcmp.eq.s32.totalorder %v246, %v1147
        %vm1178 = vcmp.eq.s32.totalorder %v247, %v1143
        %vm1179 = vcmp.eq.s32.totalorder %v247, %v1147
        %v1180 = vsel %vm1148, %v868, 0.0
        %v1181 = vsel %vm1149, %v870, 0.0
        %v1182 = vsel %vm1150, %v872, 0.0
        %v1183 = vsel %vm1151, %v874, 0.0
        %v1184 = vsel %vm1152, %v878, 0.0
        %v1185 = vsel %vm1153, %v880, 0.0
        %v1186 = vsel %vm1154, %v882, 0.0
        %v1187 = vsel %vm1155, %v884, 0.0
        %v1188 = vsel %vm1156, %v888, 0.0
        %v1189 = vsel %vm1157, %v890, 0.0
        %v1190 = vsel %vm1158, %v892, 0.0
        %v1191 = vsel %vm1159, %v894, 0.0
        %v1192 = vsel %vm1160, %v898, 0.0
        %v1193 = vsel %vm1161, %v900, 0.0
        %v1194 = vsel %vm1162, %v902, 0.0
        %v1195 = vsel %vm1163, %v904, 0.0
        %v1196 = vsel %vm1164, %v908, 0.0
        %v1197 = vsel %vm1165, %v910, 0.0
        %v1198 = vsel %vm1166, %v912, 0.0
        %v1199 = vsel %vm1167, %v914, 0.0
        %v1200 = vsel %vm1168, %v918, 0.0
        %v1201 = vsel %vm1169, %v920, 0.0
        %v1202 = vsel %vm1170, %v922, 0.0
        %v1203 = vsel %vm1171, %v924, 0.0
        %v1204 = vsel %vm1172, %v928, 0.0
        %v1205 = vsel %vm1173, %v930, 0.0
        %v1206 = vsel %vm1174, %v932, 0.0
        %v1207 = vsel %vm1175, %v934, 0.0
        %v1208 = vsel %vm1176, %v938, 0.0
        %v1209 = vsel %vm1177, %v940, 0.0
        %v1210 = vsel %vm1178, %v942, 0.0
        %v1211 = vsel %vm1179, %v944, 0.0
        %v1212 = vadd.f32 %v1180, %v1182
        %v1213 = vadd.f32 %v1212, %v1184
        %v1214 = vadd.f32 %v1213, %v1186
        %v1215 = vadd.f32 %v1214, %v1188
        %v1216 = vadd.f32 %v1215, %v1190
        %v1217 = vadd.f32 %v1216, %v1192
        %v1218 = vadd.f32 %v1217, %v1194
        %v1219 = vadd.f32 %v1218, %v1196
        %v1220 = vadd.f32 %v1219, %v1198
        %v1221 = vadd.f32 %v1220, %v1200
        %v1222 = vadd.f32 %v1221, %v1202
        %v1223 = vadd.f32 %v1222, %v1204
        %v1224 = vadd.f32 %v1223, %v1206
        %v1225 = vadd.f32 %v1224, %v1208
        %v1226 = vadd.f32 %v1225, %v1210
        %v1227 = vrot.slane %v1226, 4
        %v1228 = vadd.f32 %v1226, %v1227
        %v1229 = vrot.slane %v1228, 2
        %v1230 = vadd.f32 %v1228, %v1229
        %v1231 = vrot.slane %v1230, 1
        %v1232 = vadd.f32 %v1230, %v1231
        %v1233 = vadd.f32 %v1181, %v1183
        %v1234 = vadd.f32 %v1233, %v1185
        %v1235 = vadd.f32 %v1234, %v1187
        %v1236 = vadd.f32 %v1235, %v1189
        %v1237 = vadd.f32 %v1236, %v1191
        %v1238 = vadd.f32 %v1237, %v1193
        %v1239 = vadd.f32 %v1238, %v1195
        %v1240 = vadd.f32 %v1239, %v1197
        %v1241 = vadd.f32 %v1240, %v1199
        %v1242 = vadd.f32 %v1241, %v1201
        %v1243 = vadd.f32 %v1242, %v1203
        %v1244 = vadd.f32 %v1243, %v1205
        %v1245 = vadd.f32 %v1244, %v1207
        %v1246 = vadd.f32 %v1245, %v1209
        %v1247 = vadd.f32 %v1246, %v1211
        %v1248 = vrot.slane %v1247, 4
        %v1249 = vadd.f32 %v1247, %v1248
        %v1250 = vrot.slane %v1249, 2
        %v1251 = vadd.f32 %v1249, %v1250
        %v1252 = vrot.slane %v1251, 1
        %v1253 = vadd.f32 %v1251, %v1252
        %v1254 = vsub.f32 %v1232, %v1130
        %v1255 = vsub.f32 %v1253, %v1131
        %v1256 = vrot.slane %v227, 7
        %vm1257 = vcmp.eq.s32.totalorder %v227, %v1256
        %v1258 = vsel %vm1257, 0.0, -1000000.0
        %vm1259 = vcmp.ne.s32.totalorder %v227, 127
        %v1261 = vrot.slane %v1258, 5
        %v1262 = vrot.slane %v1261, 4
        %v1266 = vcombine.low %v1254, %v1255
        %v1268 = vsel %vm1259, %v1262, %v1266
        %v1269 = vsub.f32 0.0, %v1268
        %v1270 = vcombine.low %v227, %v228
        %v1271 = vrot.slane %v1270, 7
        %v1272 = vrot.slane %v1271, 4
        %v1274 = vmul.f32 %v1269, %v1272
        %v1277 = vunpack.c.l.s4 1966171168
        %v1278 = vunpack.c.0.s8 %v1277
        %v1279 = vlaneseq
        %v1280 = vshrl.u32 %v1279, 7
        %v1281 = vsub.s32 %v1278, %v1280
        %v1282 = vrot.slane %v1274, %v1281
        %v1284 = vunpack.c.l.s4 1966171168
        %v1285 = vunpack.c.0.s8 %v1284
        %v1286 = vlaneseq
        %v1287 = vshrl.u32 %v1286, 7
        %v1288 = vsub.s32 %v1285, %v1287
        %v1289 = vrot.slane %v1282, %v1288
        %v1291 = vlaneseq
        %vm1292 = vcmp.ge.s32.totalorder %v1291, 0
        %vm1293 = vcmp.lt.s32.totalorder %v1291, 256
        %vm1294 = vmand %vm1292, %vm1293
        %1295 = vst.msk [vmem:[%s218] sm:$0x3] %vm1294, %v1289
        %s1296 = sand.u32 %s137, 1
        %s1297 = scalar_lea.sflag [#allocation3], %s1296
        %s1298 = sand.u32 %s137, 1
        %s1299 = smul.addr %s1298, 2
        %s1300 = scalar_lea.vmem [#allocation2], %s1299
        // Predicated region
        $region41: #{tpu_custom_call.1} parent=39 // pred_check
          %p1301 = pneg %p147
        $region42: #{tpu_custom_call.1} parent=39 // pred_check_branch
          %1303 = sbr.rel (%p1301) target = $region44
        $region43: #{tpu_custom_call.1} parent=39 // pred_region
          %s1304 = smul.u32 2, %s19
          %s1306 = ssub.s32 32, 32
          %1307 = vsyncadd %s1297, %s1306
          %s1308 = smul.addr %s1304, 16
          %s1309 = scalar_lea.hbm %s5, %s1308
          %s1311 = sshll.u32 %s1300, 4
          %s1312 = int_to_ptr.vmem [resolvable:$true] %s1311
          %1314 = dma.vmem_to_hbm [thread:$0]  %s1312, 32, %s1309, %s1297
        $region44: #{tpu_custom_call.1} parent=39 // pred_fallthru
          _
      $region40: #{tpu_custom_call.1} parent=5 // pred_fallthru
        _
      %p1315 = scmp.le.s32.totalorder 2, %s14
      // Predicated region
      $region45: #{tpu_custom_call.1} parent=5 // pred_check
        %p1316 = pneg %p1315
      $region46: #{tpu_custom_call.1} parent=5 // pred_check_branch
        %1318 = sbr.rel (%p1316) target = $region48
      $region47: #{tpu_custom_call.1} parent=5 // pred_region
        %s1319 = ssub.s32 %s14, 2
        // Predicated region
        $region49: #{tpu_custom_call.1} parent=47 // pred_check
          %p1320 = pneg %p153
        $region50: #{tpu_custom_call.1} parent=47 // pred_check_branch
          %1322 = sbr.rel (%p1320) target = $region52
        $region51: #{tpu_custom_call.1} parent=47 // pred_region
          %s1323 = sand.u32 %s138, 1
          %s1324 = scalar_lea.sflag [#allocation3], %s1323
          %s1325 = sand.u32 %s138, 1
          %s1326 = smul.addr %s1325, 2
          %s1327 = scalar_lea.vmem [#allocation2], %s1326
          %1328 = dma.done %s1324, 32
        $region52: #{tpu_custom_call.1} parent=47 // pred_fallthru
          _
      $region48: #{tpu_custom_call.1} parent=5 // pred_fallthru
        _
    $region6: #{tpu_custom_call.1} parent=1 // loop_footer
      %s18 = sadd.s32 1, %s14
    $region7: #{tpu_custom_call.1} parent=1 // loop_footer_branch
      %13 = sbr.rel target = $region3
    $region8: #{tpu_custom_call.1} parent=1 // loop_exit
      _
    %1329 = vsyncpa [#allocation3], 1
    %s1330 = scalar_lea.sflag [#allocation3], 1
    %1331 = vsyncpa %s1330, 1

</llo_original>
